<compile_context>
chip_gen: v7x
topology: tpu7x:2x2x1
jax: 0.10.0
libtpu: 0.0.40
codegen_flags: <defaults>
</compile_context>

<pallas_src>
import jax
import jax.numpy as jnp
from jax.experimental import pallas as pl
from jax.experimental.pallas import tpu as pltpu


def _backprojection_kernel(invk_ref, depth_ref, out_ref):
    # invk_ref : (B, 16) f32 in SMEM  — row-major flattened 4x4 inv_K per batch
    # depth_ref: (1, 1, HT, W) f32 in VMEM
    # out_ref  : (1, 4, HT, W) f32 in VMEM
    b = pl.program_id(0)
    jt = pl.program_id(1)
    ht = depth_ref.shape[2]
    w = depth_ref.shape[3]

    # Pixel coordinates for this tile, generated on-chip (no HBM traffic).
    # x = column index, y = absolute row index (tile offset + local row).
    col = jax.lax.broadcasted_iota(jnp.int32, (ht, w), 1)
    row = jax.lax.broadcasted_iota(jnp.int32, (ht, w), 0) + jt * ht
    xx = col.astype(jnp.float32)
    yy = row.astype(jnp.float32)

    d = depth_ref[0, 0]                       # (HT, W)

    # cam_p_euc[i] = depth * (K[i,0]*x + K[i,1]*y + K[i,2]) ; unrolled VPU MAC.
    for i in range(3):
        k0 = invk_ref[b, 4 * i + 0]
        k1 = invk_ref[b, 4 * i + 1]
        k2 = invk_ref[b, 4 * i + 2]
        out_ref[0, i] = d * (k0 * xx + k1 * yy + k2)

    # Homogeneous ones row.
    out_ref[0, 3] = jnp.ones_like(d)


def backprojection(depth, inv_K, *, h_tile=None):
    """depth: (B, 1, H, W) f32, inv_K: (B, 4, 4) f32 -> (B, 4, H*W) f32."""
    B, _, H, W = depth.shape
    depth = depth.astype(jnp.float32)
    invk_flat = inv_K.astype(jnp.float32).reshape(B, 16)

    if h_tile is None:
        # ~64K pixels per tile -> ~1.3 MiB/step working set (x2 double buffer),
        # comfortably inside every generation's VMEM while amortizing the
        # per-grid-step overhead.
        target_pixels = 64 * 1024
        ht = max(1, target_pixels // max(W, 1))
        if ht >= H:
            h_tile = H
        else:
            h_tile = max(8, (ht // 8) * 8)       # sublane-aligned
    n_h = pl.cdiv(H, h_tile)

    out4d = pl.pallas_call(
        _backprojection_kernel,
        out_shape=jax.ShapeDtypeStruct((B, 4, H, W), jnp.float32),
        grid=(B, n_h),
        in_specs=[
            # Tiny 4x4-per-batch matrix: whole array resident in SMEM,
            # read as scalars inside the kernel.
            pl.BlockSpec(memory_space=pltpu.MemorySpace.SMEM),
            # Depth tile: dense (H_tile, W) sublane x lane slab.
            pl.BlockSpec((1, 1, h_tile, W), lambda b, j: (b, 0, j, 0)),
        ],
        out_specs=pl.BlockSpec((1, 4, h_tile, W), lambda b, j: (b, 0, j, 0)),
        compiler_params=pltpu.CompilerParams(
            dimension_semantics=("parallel", "parallel")),
    )(invk_flat, depth)

    # PyTorch forward returns (B, 4, H*W); contiguous 4-D -> 3-D reshape is a
    # free view outside the kernel.
    return out4d.reshape(B, 4, H * W)


if __name__ == "__main__":
    B, H, W = 2, 16, 16
    HW = H * W

    key = jax.random.PRNGKey(0)
    k_depth, k_noise = jax.random.split(key)

    # depth: positive values, NCHW layout (B, 1, H, W)
    depth = jax.random.uniform(k_depth, (B, 1, H, W), jnp.float32,
                               minval=0.5, maxval=5.0)

    # Deterministic inverse-intrinsics (B, 4, 4)
    K_intr = jnp.array([[W / 2.0, 0.0, W / 2.0, 0.0],
                        [0.0, H / 2.0, H / 2.0, 0.0],
                        [0.0, 0.0, 1.0, 0.0],
                        [0.0, 0.0, 0.0, 1.0]], dtype=jnp.float32)
    inv_K_single = jnp.linalg.inv(K_intr)
    jitter = 0.01 * jax.random.normal(k_noise, (B, 4, 4), jnp.float32)
    inv_K = jnp.tile(inv_K_single[None], (B, 1, 1)) + jitter

    out = backprojection(depth, inv_K)
    out = jax.block_until_ready(out)

    # Pure-JAX reference mirroring the PyTorch module (coord buffer as in __init__).
    yy, xx = jnp.meshgrid(jnp.arange(H, dtype=jnp.float32),
                          jnp.arange(W, dtype=jnp.float32),
                          indexing="ij")                      # torch.meshgrid default
    coord = jnp.stack([xx.reshape(-1), yy.reshape(-1),
                       jnp.ones(HW, jnp.float32)], axis=0)    # (3, HW)
    coord = jnp.tile(coord[None], (B, 1, 1))                  # (B, 3, HW)
    cam_p_norm = jnp.einsum("bij,bjp->bip", inv_K[:, :3, :3], coord)
    cam_p_euc = depth.reshape(B, 1, -1) * cam_p_norm
    ref = jnp.concatenate([cam_p_euc, jnp.ones((B, 1, HW), jnp.float32)], axis=1)

    assert out.shape == (B, 4, HW)
    assert jnp.allclose(out, ref, atol=1e-5, rtol=1e-5)
    print("KERNEL_OK")
</pallas_src>

<mosaic_0001>
module attributes {stable_mosaic.version = 11 : i64} {
  func.func @_backprojection_kernel(%arg0: i32, %arg1: i32, %arg2: memref<2x16xf32, #tpu.memory_space<smem>>, %arg3: memref<1x1x16x16xf32, #tpu.memory_space<vmem>>, %arg4: memref<1x4x16x16xf32, #tpu.memory_space<vmem>>) attributes {dimension_semantics = [#tpu.dimension_semantics<parallel>, #tpu.dimension_semantics<parallel>], iteration_bounds = array<i64: 2, 1>, scalar_prefetch = 0 : i64, scratch_operands = 0 : i64, tpu.core_type = #tpu.core_type<tc>, window_params = [{transform_indices = @transform_0, window_bounds = array<i64: 2, 16>}, {transform_indices = @transform_1, window_bounds = array<i64: 1, 1, 16, 16>}, {transform_indices = @transform_2, window_bounds = array<i64: 1, 4, 16, 16>}]} {
    %0 = tpu.iota {dimensions = array<i32: 1>} : vector<16x16xi32>
    %1 = tpu.iota {dimensions = array<i32: 0>} : vector<16x16xi32>
    %c16_i32 = arith.constant 16 : i32
    %2 = arith.muli %arg1, %c16_i32 : i32
    %3 = vector.broadcast %2 : i32 to vector<16x16xi32>
    %4 = arith.addi %1, %3 : vector<16x16xi32>
    %5 = arith.sitofp %0 : vector<16x16xi32> to vector<16x16xf32>
    %6 = arith.sitofp %4 : vector<16x16xi32> to vector<16x16xf32>
    %c0 = arith.constant 0 : index
    %c0_0 = arith.constant 0 : index
    %c0_1 = arith.constant 0 : index
    %c0_2 = arith.constant 0 : index
    %7 = vector.load %arg3[%c0, %c0_0, %c0_1, %c0_2] : memref<1x1x16x16xf32, #tpu.memory_space<vmem>>, vector<1x1x16x16xf32>
    %8 = vector.shape_cast %7 : vector<1x1x16x16xf32> to vector<16x16xf32>
    %9 = arith.index_cast %arg0 : i32 to index
    %c0_3 = arith.constant 0 : index
    %10 = memref.load %arg2[%9, %c0_3] : memref<2x16xf32, #tpu.memory_space<smem>>
    %11 = arith.index_cast %arg0 : i32 to index
    %c1 = arith.constant 1 : index
    %12 = memref.load %arg2[%11, %c1] : memref<2x16xf32, #tpu.memory_space<smem>>
    %13 = arith.index_cast %arg0 : i32 to index
    %c2 = arith.constant 2 : index
    %14 = memref.load %arg2[%13, %c2] : memref<2x16xf32, #tpu.memory_space<smem>>
    %15 = vector.broadcast %10 : f32 to vector<16x16xf32>
    %16 = arith.mulf %15, %5 : vector<16x16xf32>
    %17 = vector.broadcast %12 : f32 to vector<16x16xf32>
    %18 = arith.mulf %17, %6 : vector<16x16xf32>
    %19 = arith.addf %16, %18 : vector<16x16xf32>
    %20 = vector.broadcast %14 : f32 to vector<16x16xf32>
    %21 = arith.addf %19, %20 : vector<16x16xf32>
    %22 = arith.mulf %8, %21 : vector<16x16xf32>
    %c0_4 = arith.constant 0 : index
    %c0_5 = arith.constant 0 : index
    %c0_6 = arith.constant 0 : index
    %c0_7 = arith.constant 0 : index
    %23 = vector.load %arg4[%c0_4, %c0_5, %c0_6, %c0_7] : memref<1x4x16x16xf32, #tpu.memory_space<vmem>>, vector<1x1x16x16xf32>
    %24 = vector.shape_cast %23 : vector<1x1x16x16xf32> to vector<16x16xf32>
    %25 = vector.shape_cast %22 : vector<16x16xf32> to vector<1x1x16x16xf32>
    tpu.vector_store %arg4[%c0_4, %c0_5, %c0_6, %c0_7], %25 {strides = array<i32>} : memref<1x4x16x16xf32, #tpu.memory_space<vmem>>, vector<1x1x16x16xf32>,
    %26 = arith.index_cast %arg0 : i32 to index
    %c4 = arith.constant 4 : index
    %27 = memref.load %arg2[%26, %c4] : memref<2x16xf32, #tpu.memory_space<smem>>
    %28 = arith.index_cast %arg0 : i32 to index
    %c5 = arith.constant 5 : index
    %29 = memref.load %arg2[%28, %c5] : memref<2x16xf32, #tpu.memory_space<smem>>
    %30 = arith.index_cast %arg0 : i32 to index
    %c6 = arith.constant 6 : index
    %31 = memref.load %arg2[%30, %c6] : memref<2x16xf32, #tpu.memory_space<smem>>
    %32 = vector.broadcast %27 : f32 to vector<16x16xf32>
    %33 = arith.mulf %32, %5 : vector<16x16xf32>
    %34 = vector.broadcast %29 : f32 to vector<16x16xf32>
    %35 = arith.mulf %34, %6 : vector<16x16xf32>
    %36 = arith.addf %33, %35 : vector<16x16xf32>
    %37 = vector.broadcast %31 : f32 to vector<16x16xf32>
    %38 = arith.addf %36, %37 : vector<16x16xf32>
    %39 = arith.mulf %8, %38 : vector<16x16xf32>
    %c0_8 = arith.constant 0 : index
    %c1_9 = arith.constant 1 : index
    %c0_10 = arith.constant 0 : index
    %c0_11 = arith.constant 0 : index
    %40 = vector.load %arg4[%c0_8, %c1_9, %c0_10, %c0_11] : memref<1x4x16x16xf32, #tpu.memory_space<vmem>>, vector<1x1x16x16xf32>
    %41 = vector.shape_cast %40 : vector<1x1x16x16xf32> to vector<16x16xf32>
    %42 = vector.shape_cast %39 : vector<16x16xf32> to vector<1x1x16x16xf32>
    tpu.vector_store %arg4[%c0_8, %c1_9, %c0_10, %c0_11], %42 {strides = array<i32>} : memref<1x4x16x16xf32, #tpu.memory_space<vmem>>, vector<1x1x16x16xf32>,
    %43 = arith.index_cast %arg0 : i32 to index
    %c8 = arith.constant 8 : index
    %44 = memref.load %arg2[%43, %c8] : memref<2x16xf32, #tpu.memory_space<smem>>
    %45 = arith.index_cast %arg0 : i32 to index
    %c9 = arith.constant 9 : index
    %46 = memref.load %arg2[%45, %c9] : memref<2x16xf32, #tpu.memory_space<smem>>
    %47 = arith.index_cast %arg0 : i32 to index
    %c10 = arith.constant 10 : index
    %48 = memref.load %arg2[%47, %c10] : memref<2x16xf32, #tpu.memory_space<smem>>
    %49 = vector.broadcast %44 : f32 to vector<16x16xf32>
    %50 = arith.mulf %49, %5 : vector<16x16xf32>
    %51 = vector.broadcast %46 : f32 to vector<16x16xf32>
    %52 = arith.mulf %51, %6 : vector<16x16xf32>
    %53 = arith.addf %50, %52 : vector<16x16xf32>
    %54 = vector.broadcast %48 : f32 to vector<16x16xf32>
    %55 = arith.addf %53, %54 : vector<16x16xf32>
    %56 = arith.mulf %8, %55 : vector<16x16xf32>
    %c0_12 = arith.constant 0 : index
    %c2_13 = arith.constant 2 : index
    %c0_14 = arith.constant 0 : index
    %c0_15 = arith.constant 0 : index
    %57 = vector.load %arg4[%c0_12, %c2_13, %c0_14, %c0_15] : memref<1x4x16x16xf32, #tpu.memory_space<vmem>>, vector<1x1x16x16xf32>
    %58 = vector.shape_cast %57 : vector<1x1x16x16xf32> to vector<16x16xf32>
    %59 = vector.shape_cast %56 : vector<16x16xf32> to vector<1x1x16x16xf32>
    tpu.vector_store %arg4[%c0_12, %c2_13, %c0_14, %c0_15], %59 {strides = array<i32>} : memref<1x4x16x16xf32, #tpu.memory_space<vmem>>, vector<1x1x16x16xf32>,
    %cst = arith.constant 1.000000e+00 : f32
    %60 = vector.broadcast %cst : f32 to vector<16x16xf32>
    %c0_16 = arith.constant 0 : index
    %c3 = arith.constant 3 : index
    %c0_17 = arith.constant 0 : index
    %c0_18 = arith.constant 0 : index
    %61 = vector.load %arg4[%c0_16, %c3, %c0_17, %c0_18] : memref<1x4x16x16xf32, #tpu.memory_space<vmem>>, vector<1x1x16x16xf32>
    %62 = vector.shape_cast %61 : vector<1x1x16x16xf32> to vector<16x16xf32>
    %63 = vector.shape_cast %60 : vector<16x16xf32> to vector<1x1x16x16xf32>
    tpu.vector_store %arg4[%c0_16, %c3, %c0_17, %c0_18], %63 {strides = array<i32>} : memref<1x4x16x16xf32, #tpu.memory_space<vmem>>, vector<1x1x16x16xf32>,
    return
  }
  func.func @transform_0(%arg0: i32, %arg1: i32) -> (i32, i32) {
    %c0_i32 = arith.constant 0 : i32
    %c0_i32_0 = arith.constant 0 : i32
    %c0_i32_1 = arith.constant 0 : i32
    return %c0_i32, %c0_i32_0 : i32, i32
  }
  func.func @transform_1(%arg0: i32, %arg1: i32) -> (i32, i32, i32, i32) {
    %c0_i32 = arith.constant 0 : i32
    %c0_i32_0 = arith.constant 0 : i32
    %c0_i32_1 = arith.constant 0 : i32
    return %arg0, %c0_i32, %arg1, %c0_i32_0 : i32, i32, i32, i32
  }
  func.func @transform_2(%arg0: i32, %arg1: i32) -> (i32, i32, i32, i32) {
    %c0_i32 = arith.constant 0 : i32
    %c0_i32_0 = arith.constant 0 : i32
    %c0_i32_1 = arith.constant 0 : i32
    return %arg0, %c0_i32, %arg1, %c0_i32_0 : i32, i32, i32, i32
  }
}

</mosaic_0001>

<llo_original>
// kernel: tpu_custom_call.1
$region0: #{tpu_custom_call.1}
  #allocation0 [shape = 'u32[]', space=smem, size = 0x4, offset = 0x4, fixed_abs, tag = 'smem constant byte address 0x4 - core index']
  #allocation1 [shape = 'u32[144,128]{1,0:T(1,128)}', space=vmem, size = 0x12000, scoped, tag = 'internal scratch']
  %s0 = inlined_call_operand.hbm [shape: f32[2,16], index: 0, kind: input, shape index: {}]
  %s1 = inlined_call_operand.hbm [shape: f32[2,1,16,16], index: 1, kind: input, shape index: {}]
  %s2 = inlined_call_operand.hbm [shape: f32[2,4,16,16], index: 2, kind: output, shape index: {}]
  %s3 = sld [smem:[#allocation0]]
  $region49: #{tpu_custom_call.1} parent=0
    _
  %s5 = ssub.s32 1, %s3
  %s6 = scalar_select 0, %s5, %s3
  $region1: #{tpu_custom_call.1} parent=0
    #allocation2 [shape = 'u8[1024]{0}', space=smem, size = 0x400, scoped, tag = 'input window, operand 0, single buffered']
    #allocation3 [shape = 's32[2]{0}', space=sflag, size = 0x8, scoped, tag = 'scoped memory for tpu_custom_call.1']
    #allocation4 [shape = 's32[2]{0}', space=sflag, size = 0x8, scoped, tag = 'scoped memory for tpu_custom_call.1']
    #allocation5 [shape = 's32[2]{0}', space=sflag, size = 0x8, scoped, tag = 'scoped memory for tpu_custom_call.1']
    #allocation6 [shape = 'u8[16384]{0}', space=vmem, size = 0x4000, scoped, tag = 'input window, operand 1']
    #allocation7 [shape = 'u8[65536]{0}', space=vmem, size = 0x10000, scoped, tag = 'output window, operand 0']
    %7 = vsyncpa [#allocation5], 0
    %8 = vsyncpa [#allocation3], 0
    %s9 = scalar_lea.sflag [#allocation3], 1
    %10 = vsyncpa %s9, 0
    %11 = vsyncpa [#allocation4], 0
    %s12 = scalar_lea.sflag [#allocation4], 1
    %13 = vsyncpa %s12, 0
    loop: start=0, step=1, limit=4
    $region2: #{tpu_custom_call.1} parent=1 // loop_pre_header
      _
    $region3: #{tpu_custom_call.1} parent=1 // loop_header
      %s15 = sphi 0, %s19
      %p16 = scmp.ge.s32.totalorder %s15, 4
      %s22 = sphi 0, %s34
      %s23 = sphi 0, %s30
      %s24 = sphi 0, %s22
      %s25 = sphi 0, %s23
      %s26 = sphi 0, %s24
      %s27 = sphi 0, %s25
      %s35 = sphi 0, %s35
      %s37 = sphi 0, %s35
      %s38 = sphi 0, %s37
      %s52 = sphi 0, %s38
      %s60 = sphi 0, %s62
      %s63 = sphi 0, %s60
      %s64 = sphi 0, %s63
      %s80 = sphi 0, %s64
      %s88 = sphi 0, %s90
      %s91 = sphi 0, %s88
      %s92 = sphi 0, %s91
      %s108 = sphi 0, %s92
    $region4: #{tpu_custom_call.1} parent=1 // loop_header_branch
      %18 = sbr.rel (%p16) target = $region8
    $region5: #{tpu_custom_call.1} parent=1 // loop_body
      %s20 = ssub.s32 %s15, 1
      %s21 = ssub.s32 %s15, 2
      %s28 = sadd.s32 1, %s23
      %p29 = scmp.ge.s32.totalorder %s28, 1
      %s30 = scalar_select %p29, 0, %s28
      %s31 = sadd.s32 1, %s22
      %s32 = scalar_select %p29, %s31, %s22
      %p33 = scmp.ge.s32.totalorder %s32, 2
      %s34 = scalar_select %p33, 0, %s32
      %s36 = sadd.s32 %s35, 1
      %p39 = scmp.eq.s32.totalorder %s15, 1
      %p40 = scmp.ne.s32.totalorder %s35, %s37
      %p41 = scmp.eq.s32.totalorder %s15, 0
      %p42 = por %p40, %p41
      %p43 = scmp.ne.s32.totalorder %s35, %s37
      %p44 = scmp.eq.s32.totalorder %s20, 1
      %p45 = por %p43, %p44
      %p46 = scmp.ne.s32.totalorder %s37, %s38
      %p47 = scmp.eq.s32.totalorder %s20, 0
      %p48 = por %p46, %p47
      %p49 = scmp.ne.s32.totalorder %s37, %s38
      %p50 = scmp.eq.s32.totalorder %s21, 1
      %p51 = por %p49, %p50
      %p53 = scmp.ne.s32.totalorder %s38, %s52
      %p54 = scmp.eq.s32.totalorder %s21, 0
      %p55 = por %p53, %p54
      %s56 = ssub.s32 %s22, %s34
      %s57 = ssub.s32 %s23, %s30
      %s58 = sor.u32 %s56, %s57
      %p59 = scmp.eq.s32.totalorder %s58, 0
      %s61 = sadd.s32 %s60, 1
      %s62 = scalar_select %p59, %s60, %s61
      %p65 = pneg %p59
      %p66 = scmp.eq.s32.totalorder %s15, 1
      %p67 = por %p65, %p66
      %p68 = scmp.ne.s32.totalorder %s60, %s63
      %p69 = scmp.eq.s32.totalorder %s15, 0
      %p70 = por %p68, %p69
      %p71 = scmp.ne.s32.totalorder %s60, %s63
      %p72 = scmp.eq.s32.totalorder %s20, 1
      %p73 = por %p71, %p72
      %p74 = scmp.ne.s32.totalorder %s63, %s64
      %p75 = scmp.eq.s32.totalorder %s20, 0
      %p76 = por %p74, %p75
      %p77 = scmp.ne.s32.totalorder %s63, %s64
      %p78 = scmp.eq.s32.totalorder %s21, 1
      %p79 = por %p77, %p78
      %p81 = scmp.ne.s32.totalorder %s64, %s80
      %p82 = scmp.eq.s32.totalorder %s21, 0
      %p83 = por %p81, %p82
      %s84 = ssub.s32 %s22, %s34
      %s85 = ssub.s32 %s23, %s30
      %s86 = sor.u32 %s84, %s85
      %p87 = scmp.eq.s32.totalorder %s86, 0
      %s89 = sadd.s32 %s88, 1
      %s90 = scalar_select %p87, %s88, %s89
      %p93 = pneg %p87
      %p94 = scmp.eq.s32.totalorder %s15, 1
      %p95 = por %p93, %p94
      %p96 = scmp.ne.s32.totalorder %s88, %s91
      %p97 = scmp.eq.s32.totalorder %s15, 0
      %p98 = por %p96, %p97
      %p99 = scmp.ne.s32.totalorder %s88, %s91
      %p100 = scmp.eq.s32.totalorder %s20, 1
      %p101 = por %p99, %p100
      %p102 = scmp.ne.s32.totalorder %s91, %s92
      %p103 = scmp.eq.s32.totalorder %s20, 0
      %p104 = por %p102, %p103
      %p105 = scmp.ne.s32.totalorder %s91, %s92
      %p106 = scmp.eq.s32.totalorder %s21, 1
      %p107 = por %p105, %p106
      %p109 = scmp.ne.s32.totalorder %s92, %s108
      %p110 = scmp.eq.s32.totalorder %s21, 0
      %p111 = por %p109, %p110
      %p112 = scmp.le.s32.totalorder 1, %s15
      %p113 = scmp.lt.s32.totalorder %s15, 3
      %p114 = pnand %p112, %p113
      %p115 = pneg %p114
      // Predicated region
      $region9: #{tpu_custom_call.1} parent=5 // pred_check
        _
      $region10: #{tpu_custom_call.1} parent=5 // pred_check_branch
        %117 = sbr.rel (%p114) target = $region12
      $region11: #{tpu_custom_call.1} parent=5 // pred_region
        %s118 = ssub.s32 %s15, 1
        // Predicated region
        $region13: #{tpu_custom_call.1} parent=11 // pred_check
          %p119 = pneg %p48
        $region14: #{tpu_custom_call.1} parent=11 // pred_check_branch
          %121 = sbr.rel (%p119) target = $region16
        $region15: #{tpu_custom_call.1} parent=11 // pred_region
          %s123 = ssub.s32 32, 32
          %124 = vsyncadd [#allocation5], %s123
          %127 = dma.hbm_to_smem %s0, 32, [#allocation2], [#allocation5]
        $region16: #{tpu_custom_call.1} parent=11 // pred_fallthru
          _
      $region12: #{tpu_custom_call.1} parent=5 // pred_fallthru
        _
      %p128 = scmp.lt.s32.totalorder %s15, 2
      // Predicated region
      $region17: #{tpu_custom_call.1} parent=5 // pred_check
        %p129 = pneg %p128
      $region18: #{tpu_custom_call.1} parent=5 // pred_check_branch
        %131 = sbr.rel (%p129) target = $region20
      $region19: #{tpu_custom_call.1} parent=5 // pred_region
        // Predicated region
        $region21: #{tpu_custom_call.1} parent=19 // pred_check
          %p132 = pneg %p70
        $region22: #{tpu_custom_call.1} parent=19 // pred_check_branch
          %134 = sbr.rel (%p132) target = $region24
        $region23: #{tpu_custom_call.1} parent=19 // pred_region
          %s135 = sand.u32 %s60, 1
          %s136 = scalar_lea.sflag [#allocation3], %s135
          %s137 = sand.u32 %s60, 1
          %s138 = smul.addr %s137, 16
          %s139 = scalar_lea.vmem [#allocation6], %s138
          %s140 = smul.u32 2, %s23
          %s142 = ssub.s32 256, 256
          %143 = vsyncadd %s136, %s142
          %s144 = smul.addr %s22, 2
          %s145 = sadd.s32 %s140, %s144
          %s146 = smul.addr %s145, 128
          %s147 = scalar_lea.hbm %s1, %s146
          %s148 = sshll.u32 %s139, 4
          %s149 = int_to_ptr.vmem [resolvable:$true] %s148
          %154 = dma.hbm_to_vmem [thread:$0]  %s147, 256, %s149, %s136, 128, 128, 8
        $region24: #{tpu_custom_call.1} parent=19 // pred_fallthru
          _
      $region20: #{tpu_custom_call.1} parent=5 // pred_fallthru
        _
      %p155 = scmp.le.s32.totalorder 1, %s15
      %p156 = scmp.lt.s32.totalorder %s15, 3
      %p157 = pnand %p155, %p156
      %p158 = pneg %p157
      // Predicated region
      $region25: #{tpu_custom_call.1} parent=5 // pred_check
        _
      $region26: #{tpu_custom_call.1} parent=5 // pred_check_branch
        %160 = sbr.rel (%p157) target = $region28
      $region27: #{tpu_custom_call.1} parent=5 // pred_region
        %s161 = ssub.s32 %s15, 1
        // Predicated region
        $region29: #{tpu_custom_call.1} parent=27 // pred_check
          %p162 = pneg %p48
        $region30: #{tpu_custom_call.1} parent=27 // pred_check_branch
          %164 = sbr.rel (%p162) target = $region32
        $region31: #{tpu_custom_call.1} parent=27 // pred_region
          %165 = dma.done [#allocation5], 32
        $region32: #{tpu_custom_call.1} parent=27 // pred_fallthru
          _
        %s166 = sand.u32 %s63, 1
        %s167 = scalar_lea.sflag [#allocation3], %s166
        %s168 = sand.u32 %s63, 1
        %s169 = smul.addr %s168, 16
        %s170 = scalar_lea.vmem [#allocation6], %s169
        // Predicated region
        $region33: #{tpu_custom_call.1} parent=27 // pred_check
          %p171 = pneg %p76
        $region34: #{tpu_custom_call.1} parent=27 // pred_check_branch
          %173 = sbr.rel (%p171) target = $region36
        $region35: #{tpu_custom_call.1} parent=27 // pred_region
          %174 = dma.done %s167, 256
        $region36: #{tpu_custom_call.1} parent=27 // pred_fallthru
          _
        %175 = sfence
        %p176 = pneg %p48
        %p177 = pneg %p45
        %s178 = sand.u32 %s63, 1
        %s179 = scalar_lea.sflag [#allocation3], %s178
        %s180 = sand.u32 %s63, 1
        %s181 = smul.addr %s180, 16
        %s182 = scalar_lea.vmem [#allocation6], %s181
        %p183 = pneg %p76
        %p184 = pneg %p73
        %p185 = pneg %p104
        %p186 = pneg %p101
        %s187 = sand.u32 %s91, 1
        %s188 = scalar_lea.sflag [#allocation4], %s187
        %s189 = sand.u32 %s91, 1
        %s190 = smul.addr %s189, 64
        %s191 = scalar_lea.vmem [#allocation7], %s190
        %s192 = smul.u32 2, %s25
        %s193 = smul.u32 2, %s25
        %v194 = vlaneseq
        %v195 = vand.u32 %v194, 127
        %v196 = vlaneseq
        %v197 = vshrl.u32 %v196, 7
        %v198 = vadd.s32 %v197, 8
        %s199 = smul.u32 %s25, 16
        %v200 = vstv %s199
        %v201 = vadd.s32 %v197, %v200
        %v202 = vadd.s32 %v198, %v200
        %v203 = vcvt.s32.f32 %v195
        %v204 = vcvt.s32.f32 %v201
        %v205 = vcvt.s32.f32 %v202
        %v206 = vld [vmem:[%s170] sm:$0xff]
        %v207 = vld [vmem:[%s170 + $0x8] sm:$0xff]
        %s208 = smul.u32 %s24, 128
        %s209 = sld [smem:[#allocation2 + %s208]]
        %s210 = sadd.s32 %s208, 1
        %s211 = sld [smem:[#allocation2 + %s210]]
        %s212 = sadd.s32 %s208, 2
        %s213 = sld [smem:[#allocation2 + %s212]]
        %v214 = vstv %s209
        %v215 = vmul.f32 %v214, %v203
        %v216 = vstv %s211
        %v217 = vmul.f32 %v216, %v204
        %v218 = vmul.f32 %v216, %v205
        %v219 = vadd.f32 %v215, %v217
        %v220 = vadd.f32 %v215, %v218
        %v221 = vstv %s213
        %v222 = vadd.f32 %v219, %v221
        %v223 = vadd.f32 %v220, %v221
        %v224 = vmul.f32 %v206, %v222
        %v225 = vmul.f32 %v207, %v223
        %vm226 = vcmask 130048
        %227 = vst.msk [vmem:[%s191] sm:$0xff] %vm226, %v224
        %228 = vst.msk [vmem:[%s191 + $0x8] sm:$0xff] %vm226, %v225
        %s229 = sadd.s32 %s208, 4
        %s230 = sld [smem:[#allocation2 + %s229]]
        %s231 = sadd.s32 %s208, 5
        %s232 = sld [smem:[#allocation2 + %s231]]
        %s233 = sadd.s32 %s208, 6
        %s234 = sld [smem:[#allocation2 + %s233]]
        %v235 = vstv %s230
        %v236 = vmul.f32 %v235, %v203
        %v237 = vstv %s232
        %v238 = vmul.f32 %v237, %v204
        %v239 = vmul.f32 %v237, %v205
        %v240 = vadd.f32 %v236, %v238
        %v241 = vadd.f32 %v236, %v239
        %v242 = vstv %s234
        %v243 = vadd.f32 %v240, %v242
        %v244 = vadd.f32 %v241, %v242
        %v245 = vmul.f32 %v206, %v243
        %v246 = vmul.f32 %v207, %v244
        %s247 = scalar_lea.vmem %s191, 16 [#allocation7]
        %248 = vst.msk [vmem:[%s247] sm:$0xff] %vm226, %v245
        %249 = vst.msk [vmem:[%s247 + $0x8] sm:$0xff] %vm226, %v246
        %s250 = sadd.s32 %s208, 8
        %s251 = sld [smem:[#allocation2 + %s250]]
        %s252 = sadd.s32 %s208, 9
        %s253 = sld [smem:[#allocation2 + %s252]]
        %s254 = sadd.s32 %s208, 10
        %s255 = sld [smem:[#allocation2 + %s254]]
        %v256 = vstv %s251
        %v257 = vmul.f32 %v256, %v203
        %v258 = vstv %s253
        %v259 = vmul.f32 %v258, %v204
        %v260 = vmul.f32 %v258, %v205
        %v261 = vadd.f32 %v257, %v259
        %v262 = vadd.f32 %v257, %v260
        %v263 = vstv %s255
        %v264 = vadd.f32 %v261, %v263
        %v265 = vadd.f32 %v262, %v263
        %v266 = vmul.f32 %v206, %v264
        %v267 = vmul.f32 %v207, %v265
        %s268 = scalar_lea.vmem %s191, 32 [#allocation7]
        %269 = vst.msk [vmem:[%s268] sm:$0xff] %vm226, %v266
        %270 = vst.msk [vmem:[%s268 + $0x8] sm:$0xff] %vm226, %v267
        %s271 = scalar_lea.vmem %s191, 48 [#allocation7]
        %272 = vst.msk [vmem:[%s271] sm:$0xff] %vm226, 1.0
        %273 = vst.msk [vmem:[%s271 + $0x8] sm:$0xff] %vm226, 1.0
        %s274 = sand.u32 %s91, 1
        %s275 = scalar_lea.sflag [#allocation4], %s274
        %s276 = sand.u32 %s91, 1
        %s277 = smul.addr %s276, 64
        %s278 = scalar_lea.vmem [#allocation7], %s277
        // Predicated region
        $region37: #{tpu_custom_call.1} parent=27 // pred_check
          %p279 = pneg %p101
        $region38: #{tpu_custom_call.1} parent=27 // pred_check_branch
          %281 = sbr.rel (%p279) target = $region40
        $region39: #{tpu_custom_call.1} parent=27 // pred_region
          %s282 = smul.u32 2, %s25
          %s284 = ssub.s32 1024, 1024
          %285 = vsyncadd %s275, %s284
          %s286 = smul.addr %s24, 8
          %s287 = sadd.s32 %s282, %s286
          %s288 = smul.addr %s287, 128
          %s289 = scalar_lea.hbm %s2, %s288
          %s290 = sshll.u32 %s278, 4
          %s291 = int_to_ptr.vmem [resolvable:$true] %s290
          %296 = dma.vmem_to_hbm [thread:$0]  %s291, 1024, %s289, %s275, 128, 128, 8
        $region40: #{tpu_custom_call.1} parent=27 // pred_fallthru
          _
      $region28: #{tpu_custom_call.1} parent=5 // pred_fallthru
        _
      %p297 = scmp.le.s32.totalorder 2, %s15
      // Predicated region
      $region41: #{tpu_custom_call.1} parent=5 // pred_check
        %p298 = pneg %p297
      $region42: #{tpu_custom_call.1} parent=5 // pred_check_branch
        %300 = sbr.rel (%p298) target = $region44
      $region43: #{tpu_custom_call.1} parent=5 // pred_region
        %s301 = ssub.s32 %s15, 2
        // Predicated region
        $region45: #{tpu_custom_call.1} parent=43 // pred_check
          %p302 = pneg %p107
        $region46: #{tpu_custom_call.1} parent=43 // pred_check_branch
          %304 = sbr.rel (%p302) target = $region48
        $region47: #{tpu_custom_call.1} parent=43 // pred_region
          %s305 = sand.u32 %s92, 1
          %s306 = scalar_lea.sflag [#allocation4], %s305
          %s307 = sand.u32 %s92, 1
          %s308 = smul.addr %s307, 64
          %s309 = scalar_lea.vmem [#allocation7], %s308
          %310 = dma.done %s306, 1024
        $region48: #{tpu_custom_call.1} parent=43 // pred_fallthru
          _
      $region44: #{tpu_custom_call.1} parent=5 // pred_fallthru
        _
    $region6: #{tpu_custom_call.1} parent=1 // loop_footer
      %s19 = sadd.s32 1, %s15
    $region7: #{tpu_custom_call.1} parent=1 // loop_footer_branch
      %14 = sbr.rel target = $region3
    $region8: #{tpu_custom_call.1} parent=1 // loop_exit
      _
    %311 = vsyncpa [#allocation3], 1
    %s312 = scalar_lea.sflag [#allocation3], 1
    %313 = vsyncpa %s312, 1
    %314 = vsyncpa [#allocation4], 1
    %s315 = scalar_lea.sflag [#allocation4], 1
    %316 = vsyncpa %s315, 1
    %317 = vsyncpa [#allocation5], 1
    %s318 = scalar_lea.sflag [#allocation5], 1
    %319 = vsyncpa %s318, 1

</llo_original>
